<compile_context>
chip_gen: v5e
topology: v5e:2x2
jax: 0.10.0
libtpu: 0.0.40
codegen_flags: <defaults>
</compile_context>

<pallas_src>
import jax
import jax.numpy as jnp
from jax.experimental import pallas as pl
from jax.experimental.pallas import tpu as pltpu


# --------------------------------------------------------------------------
# Kernel
# --------------------------------------------------------------------------
def _critic_kernel(x_ref, a_ref, w1_ref, b1_ref, w2_ref, b2_ref, w3_ref,
                   b3_ref, o_ref):
    # fc1 + relu: bf16 MXU matmul, f32 accumulation; bias/ReLU on the VPU in
    # f32.  Padded hidden1 columns have zero weights/bias -> exactly 0.
    h1 = jnp.dot(x_ref[...].astype(jnp.bfloat16), w1_ref[...],
                 preferred_element_type=jnp.float32)
    h1 = jnp.maximum(h1 + b1_ref[...], 0.0)

    # fc2(cat([h1, a], 1)) + relu as ONE MXU matmul.  The concat boundary is
    # at h1_pad (multiple of 128) so the lane concatenate is tile-aligned, and
    # the short-K nb_actions contribution is fused into the big-K matmul.
    cat = jnp.concatenate(
        [h1.astype(jnp.bfloat16), a_ref[...].astype(jnp.bfloat16)], axis=1)
    h2 = jnp.dot(cat, w2_ref[...], preferred_element_type=jnp.float32)
    h2 = jnp.maximum(h2 + b2_ref[...], 0.0)

    # fc3 directly in lane-dense (1, tb) form: (1, h2_pad) @ (tb, h2_pad)^T.
    # Output stores are contiguous/unmasked (no (tb,1) vst.msk tail); padded
    # h2 lanes have zero fc3 weights so they contribute 0.  Kept in f32
    # (M=1 matmul is negligible MXU work, better numerics).
    q = jnp.dot(w3_ref[...], h2.T, preferred_element_type=jnp.float32)
    o_ref[...] = (q + b3_ref[0]).astype(o_ref.dtype)


# --------------------------------------------------------------------------
# One-time parameter preprocessing (hoisted out of the forward path)
# --------------------------------------------------------------------------
def _round_up(n, m):
    return (n + m - 1) // m * m


def prepare_params(params):
    """Transpose / lane-pad / fold / bf16-cast the PyTorch-layout params once
    so the per-call forward is a single pallas_call."""
    w1, b1, w2, b2, w3, b3 = (params[k] for k in
                              ("w1", "b1", "w2", "b2", "w3", "b3"))
    hidden1 = w1.shape[0]
    hidden2 = w2.shape[0]
    h1_pad = _round_up(hidden1, 128)
    h2_pad = _round_up(hidden2, 128)

    w1_t = jnp.pad(jnp.asarray(w1.T), ((0, 0), (0, h1_pad - hidden1)))
    w2h_t = jnp.pad(jnp.asarray(w2[:, :hidden1].T),
                    ((0, h1_pad - hidden1), (0, h2_pad - hidden2)))
    w2a_t = jnp.pad(jnp.asarray(w2[:, hidden1:].T),
                    ((0, 0), (0, h2_pad - hidden2)))
    w2_full = jnp.concatenate([w2h_t, w2a_t], axis=0)  # [h1_pad + na, h2_pad]

    b1_p = jnp.pad(jnp.asarray(b1), (0, h1_pad - hidden1)).reshape(1, -1)
    b2_p = jnp.pad(jnp.asarray(b2), (0, h2_pad - hidden2)).reshape(1, -1)
    w3_row = jnp.pad(jnp.asarray(w3).reshape(1, -1),
                     ((0, 0), (0, h2_pad - hidden2)))

    prepped = dict(
        w1=w1_t.astype(jnp.bfloat16),          # [nb_states, h1_pad]   bf16
        b1=b1_p.astype(jnp.float32),           # [1, h1_pad]           f32
        w2=w2_full.astype(jnp.bfloat16),       # [h1_pad + na, h2_pad] bf16
        b2=b2_p.astype(jnp.float32),           # [1, h2_pad]           f32
        w3=w3_row.astype(jnp.float32),         # [1, h2_pad]           f32
        b3=jnp.asarray(b3).reshape(1).astype(jnp.float32),   # [1] -> SMEM
    )
    return jax.tree_util.tree_map(jax.block_until_ready, prepped)


# --------------------------------------------------------------------------
# Tiling choice
# --------------------------------------------------------------------------
def _choose_batch_tile(B, batch_tile):
    """Bounded by `batch_tile` (caps per-step VMEM), divides B, multiple of
    128 whenever the grid has >1 step (lane-dense (1, tb) output block), and
    <= B//2 for large B so the 'parallel' axis feeds both v7x TensorCores."""
    if B <= 256:
        return B
    cap = min(batch_tile, (B // 2) // 128 * 128)
    tb = cap
    while tb >= 128:
        if B % tb == 0:
            return tb
        tb -= 128
    return B  # irregular batch size: single full-batch tile


# --------------------------------------------------------------------------
# Forward wrapper: exactly one pallas_call per call
# --------------------------------------------------------------------------
def ua_critic_forward(x, a, prepped, *, batch_tile=1024):
    """x: [B, nb_states]; a: [B(+1), nb_actions] (trailing rows ignored, as in
    the PyTorch forward's `a[:-1]`).  Returns [B, 1] float32."""
    B, nb_states = x.shape
    nb_actions = a.shape[1]
    if B % 8 != 0:
        raise ValueError("batch size must be a multiple of 8 (TPU sublane); "
                         "pad the batch rather than slicing per call")
    if a.shape[0] < B:
        raise ValueError("`a` must have at least B rows")

    h1_pad = prepped["w1"].shape[1]
    h2_pad = prepped["w2"].shape[1]

    tb = _choose_batch_tile(B, batch_tile)
    grid = (B // tb,)

    batch_spec = lambda feat: pl.BlockSpec((tb, feat), lambda i: (i, 0))
    # Constant index_map -> weights stay VMEM-resident across grid steps.
    # (For very large hidden sizes on v7x, pipeline_mode=pl.Buffered(1) would
    #  single-buffer these; unnecessary at these sizes.)
    resident = lambda arr: pl.BlockSpec(arr.shape, lambda i: (0, 0))

    in_specs = [
        batch_spec(nb_states),                                # x
        batch_spec(nb_actions),                               # a (first B rows)
        resident(prepped["w1"]),
        resident(prepped["b1"]),
        resident(prepped["w2"]),
        resident(prepped["b2"]),
        resident(prepped["w3"]),
        pl.BlockSpec(memory_space=pltpu.MemorySpace.SMEM),    # b3 scalar
    ]
    # Lane-dense output: (1, B) with (1, tb) blocks; reshaped to (B, 1) below
    # (same contiguous bytes -> free).
    out_specs = pl.BlockSpec((1, tb), lambda i: (0, i))

    weight_bytes = sum(int(v.size) * v.dtype.itemsize for v in prepped.values())
    flops = 2 * B * (nb_states * h1_pad + (h1_pad + nb_actions) * h2_pad
                     + h2_pad)
    bytes_accessed = 4 * (int(x.size) + B * nb_actions + B) + weight_bytes

    # Per-step VMEM: double-buffered activation tiles + resident weights +
    # intermediates; 2x margin, floor 32 MiB (v5e default is 16 MiB), cap at
    # 64 MiB (v7x physical).
    vmem_est = (2 * tb * (nb_states + nb_actions + 1) * 4
                + 2 * weight_bytes
                + tb * (h1_pad * 4 + (h1_pad + nb_actions) * 2
                        + 3 * h2_pad * 4))
    vmem_limit = int(min(max(2 * vmem_est, 32 * 1024 * 1024),
                         64 * 1024 * 1024))

    out = pl.pallas_call(
        _critic_kernel,
        out_shape=jax.ShapeDtypeStruct((1, B), jnp.float32),
        grid=grid,
        in_specs=in_specs,
        out_specs=out_specs,
        compiler_params=pltpu.CompilerParams(
            dimension_semantics=("parallel",),
            vmem_limit_bytes=vmem_limit),
        cost_estimate=pl.CostEstimate(flops=flops, transcendentals=0,
                                      bytes_accessed=bytes_accessed),
    )(x, a, prepped["w1"], prepped["b1"], prepped["w2"], prepped["b2"],
      prepped["w3"], prepped["b3"])
    return out.reshape(B, 1)


# --------------------------------------------------------------------------
# Synthetic init mirroring the PyTorch __init__ / init_weights
# --------------------------------------------------------------------------
def init_params(key, nb_states, nb_actions, hidden1, hidden2, init_w=0.003):
    ks = jax.random.split(key, 6)
    v1 = 1.0 / jnp.sqrt(hidden1)          # fanin_init uses size[0]
    v2 = 1.0 / jnp.sqrt(hidden2)
    w1 = jax.random.uniform(ks[0], (hidden1, nb_states), jnp.float32, -v1, v1)
    w2 = jax.random.uniform(ks[1], (hidden2, hidden1 + nb_actions),
                            jnp.float32, -v2, v2)
    w3 = jax.random.uniform(ks[2], (1, hidden2), jnp.float32, -init_w, init_w)
    bb1 = 1.0 / jnp.sqrt(nb_states)
    bb2 = 1.0 / jnp.sqrt(hidden1 + nb_actions)
    bb3 = 1.0 / jnp.sqrt(hidden2)
    b1 = jax.random.uniform(ks[3], (hidden1,), jnp.float32, -bb1, bb1)
    b2 = jax.random.uniform(ks[4], (hidden2,), jnp.float32, -bb2, bb2)
    b3 = jax.random.uniform(ks[5], (1,), jnp.float32, -bb3, bb3)
    return dict(w1=w1, b1=b1, w2=w2, b2=b2, w3=w3, b3=b3)


def _reference_forward(x, a, p):
    # pure-JAX f32 reference of the PyTorch forward (eval path, no dropout)
    h1 = jnp.maximum(x @ p["w1"].T + p["b1"], 0.0)
    cat = jnp.concatenate([h1, a[:-1]], axis=1)
    h2 = jnp.maximum(cat @ p["w2"].T + p["b2"], 0.0)
    return h2 @ p["w3"].T + p["b3"]


# TODO(synk): forward_with_dropout (nn.Dropout) is not implemented; the
# deterministic forward() path has no dropout.  (Would use pltpu.prng_* .)

if __name__ == "__main__":
    # Small shapes consistent with the module's forward; hidden sizes chosen
    # to exercise the hidden1/hidden2 lane-padding paths (80->128, 56->128).
    B, nb_states, nb_actions = 16, 24, 6
    hidden1, hidden2 = 80, 56

    key = jax.random.PRNGKey(0)
    kx, ka, kp = jax.random.split(key, 3)
    x = jax.random.normal(kx, (B, nb_states), jnp.float32)
    # `a[:-1]` in the forward implies `a` carries one extra batch row.
    a = jax.random.normal(ka, (B + 1, nb_actions), jnp.float32)

    params = init_params(kp, nb_states, nb_actions, hidden1, hidden2)
    prepped = prepare_params(params)          # one-time, outside forward path

    out = jax.block_until_ready(ua_critic_forward(x, a, prepped))

    ref = _reference_forward(x, a, params)
    assert out.shape == (B, 1)
    # bf16 matmul operands with f32 accumulation -> loose-but-meaningful tol.
    assert jnp.allclose(out, ref, atol=2e-3, rtol=2e-2), \
        float(jnp.max(jnp.abs(out - ref)))
    print("KERNEL_OK")
</pallas_src>

<mosaic_0001>
module attributes {stable_mosaic.version = 11 : i64} {
  func.func @_critic_kernel(%arg0: i32, %arg1: memref<16x24xf32, #tpu.memory_space<vmem>>, %arg2: memref<16x6xf32, #tpu.memory_space<vmem>>, %arg3: memref<24x128xbf16, #tpu.memory_space<vmem>>, %arg4: memref<1x128xf32, #tpu.memory_space<vmem>>, %arg5: memref<134x128xbf16, #tpu.memory_space<vmem>>, %arg6: memref<1x128xf32, #tpu.memory_space<vmem>>, %arg7: memref<1x128xf32, #tpu.memory_space<vmem>>, %arg8: memref<1xf32, #tpu.memory_space<smem>>, %arg9: memref<1x16xf32, #tpu.memory_space<vmem>>) attributes {dimension_semantics = [#tpu.dimension_semantics<parallel>], iteration_bounds = array<i64: 1>, scalar_prefetch = 0 : i64, scratch_operands = 0 : i64, tpu.core_type = #tpu.core_type<tc>, window_params = [{transform_indices = @transform_0, window_bounds = array<i64: 16, 24>}, {transform_indices = @transform_1, window_bounds = array<i64: 16, 6>}, {pipeline_mode = #tpu.pipeline_mode<synchronous>, transform_indices = @transform_2, window_bounds = array<i64: 24, 128>}, {pipeline_mode = #tpu.pipeline_mode<synchronous>, transform_indices = @transform_3, window_bounds = array<i64: 1, 128>}, {pipeline_mode = #tpu.pipeline_mode<synchronous>, transform_indices = @transform_4, window_bounds = array<i64: 134, 128>}, {pipeline_mode = #tpu.pipeline_mode<synchronous>, transform_indices = @transform_5, window_bounds = array<i64: 1, 128>}, {pipeline_mode = #tpu.pipeline_mode<synchronous>, transform_indices = @transform_6, window_bounds = array<i64: 1, 128>}, {transform_indices = @transform_7, window_bounds = array<i64: 1>}, {transform_indices = @transform_8, window_bounds = array<i64: 1, 16>}]} {
    %c0 = arith.constant 0 : index
    %c0_0 = arith.constant 0 : index
    %0 = vector.load %arg1[%c0, %c0_0] : memref<16x24xf32, #tpu.memory_space<vmem>>, vector<16x24xf32>
    %1 = arith.truncf %0 : vector<16x24xf32> to vector<16x24xbf16>
    %c0_1 = arith.constant 0 : index
    %c0_2 = arith.constant 0 : index
    %2 = vector.load %arg3[%c0_1, %c0_2] : memref<24x128xbf16, #tpu.memory_space<vmem>>, vector<24x128xbf16>
    %cst = arith.constant dense<0.000000e+00> : vector<16x128xf32>
    %3 = tpu.matmul %1, %2, %cst {dimension_numbers = #tpu.dot_dimension_numbers<[1], [0], [0], [1], [0, 0, 1, 1], [], []>} : vector<16x24xbf16>, vector<24x128xbf16>, vector<16x128xf32> -> vector<16x128xf32>
    %c0_3 = arith.constant 0 : index
    %c0_4 = arith.constant 0 : index
    %4 = vector.load %arg4[%c0_3, %c0_4] : memref<1x128xf32, #tpu.memory_space<vmem>>, vector<1x128xf32>
    %5 = vector.broadcast %4 : vector<1x128xf32> to vector<16x128xf32>
    %6 = arith.addf %3, %5 : vector<16x128xf32>
    %cst_5 = arith.constant 0.000000e+00 : f32
    %7 = vector.broadcast %cst_5 : f32 to vector<16x128xf32>
    %8 = arith.maximumf %6, %7 : vector<16x128xf32>
    %9 = arith.truncf %8 : vector<16x128xf32> to vector<16x128xbf16>
    %c0_6 = arith.constant 0 : index
    %c0_7 = arith.constant 0 : index
    %10 = vector.load %arg2[%c0_6, %c0_7] : memref<16x6xf32, #tpu.memory_space<vmem>>, vector<16x6xf32>
    %11 = arith.truncf %10 : vector<16x6xf32> to vector<16x6xbf16>
    %12 = tpu.concatenate %9, %11 in 1 : vector<16x128xbf16>, vector<16x6xbf16> -> vector<16x134xbf16>
    %c0_8 = arith.constant 0 : index
    %c0_9 = arith.constant 0 : index
    %13 = vector.load %arg5[%c0_8, %c0_9] : memref<134x128xbf16, #tpu.memory_space<vmem>>, vector<134x128xbf16>
    %cst_10 = arith.constant dense<0.000000e+00> : vector<16x128xf32>
    %14 = tpu.matmul %12, %13, %cst_10 {dimension_numbers = #tpu.dot_dimension_numbers<[1], [0], [0], [1], [0, 0, 1, 1], [], []>} : vector<16x134xbf16>, vector<134x128xbf16>, vector<16x128xf32> -> vector<16x128xf32>
    %c0_11 = arith.constant 0 : index
    %c0_12 = arith.constant 0 : index
    %15 = vector.load %arg6[%c0_11, %c0_12] : memref<1x128xf32, #tpu.memory_space<vmem>>, vector<1x128xf32>
    %16 = vector.broadcast %15 : vector<1x128xf32> to vector<16x128xf32>
    %17 = arith.addf %14, %16 : vector<16x128xf32>
    %cst_13 = arith.constant 0.000000e+00 : f32
    %18 = vector.broadcast %cst_13 : f32 to vector<16x128xf32>
    %19 = arith.maximumf %17, %18 : vector<16x128xf32>
    %c0_14 = arith.constant 0 : index
    %c0_15 = arith.constant 0 : index
    %20 = vector.load %arg7[%c0_14, %c0_15] : memref<1x128xf32, #tpu.memory_space<vmem>>, vector<1x128xf32>
    %21 = tpu.transpose %19, [1, 0] : vector<16x128xf32> -> vector<128x16xf32>
    %cst_16 = arith.constant dense<0.000000e+00> : vector<1x16xf32>
    %22 = tpu.matmul %20, %21, %cst_16 {dimension_numbers = #tpu.dot_dimension_numbers<[1], [0], [0], [1], [0, 0, 1, 1], [], []>} : vector<1x128xf32>, vector<128x16xf32>, vector<1x16xf32> -> vector<1x16xf32>
    %c0_17 = arith.constant 0 : index
    %23 = memref.load %arg8[%c0_17] : memref<1xf32, #tpu.memory_space<smem>>
    %24 = vector.broadcast %23 : f32 to vector<1x16xf32>
    %25 = arith.addf %22, %24 : vector<1x16xf32>
    %c0_18 = arith.constant 0 : index
    %c0_19 = arith.constant 0 : index
    %26 = vector.load %arg9[%c0_18, %c0_19] : memref<1x16xf32, #tpu.memory_space<vmem>>, vector<1x16xf32>
    tpu.vector_store %arg9[%c0_18, %c0_19], %25 {strides = array<i32>} : memref<1x16xf32, #tpu.memory_space<vmem>>, vector<1x16xf32>,
    return
  }
  func.func @transform_0(%arg0: i32) -> (i32, i32) {
    %c0_i32 = arith.constant 0 : i32
    %c0_i32_0 = arith.constant 0 : i32
    return %arg0, %c0_i32 : i32, i32
  }
  func.func @transform_1(%arg0: i32) -> (i32, i32) {
    %c0_i32 = arith.constant 0 : i32
    %c0_i32_0 = arith.constant 0 : i32
    return %arg0, %c0_i32 : i32, i32
  }
  func.func @transform_2(%arg0: i32) -> (i32, i32) {
    %c0_i32 = arith.constant 0 : i32
    %c0_i32_0 = arith.constant 0 : i32
    %c0_i32_1 = arith.constant 0 : i32
    return %c0_i32, %c0_i32_0 : i32, i32
  }
  func.func @transform_3(%arg0: i32) -> (i32, i32) {
    %c0_i32 = arith.constant 0 : i32
    %c0_i32_0 = arith.constant 0 : i32
    %c0_i32_1 = arith.constant 0 : i32
    return %c0_i32, %c0_i32_0 : i32, i32
  }
  func.func @transform_4(%arg0: i32) -> (i32, i32) {
    %c0_i32 = arith.constant 0 : i32
    %c0_i32_0 = arith.constant 0 : i32
    %c0_i32_1 = arith.constant 0 : i32
    return %c0_i32, %c0_i32_0 : i32, i32
  }
  func.func @transform_5(%arg0: i32) -> (i32, i32) {
    %c0_i32 = arith.constant 0 : i32
    %c0_i32_0 = arith.constant 0 : i32
    %c0_i32_1 = arith.constant 0 : i32
    return %c0_i32, %c0_i32_0 : i32, i32
  }
  func.func @transform_6(%arg0: i32) -> (i32, i32) {
    %c0_i32 = arith.constant 0 : i32
    %c0_i32_0 = arith.constant 0 : i32
    %c0_i32_1 = arith.constant 0 : i32
    return %c0_i32, %c0_i32_0 : i32, i32
  }
  func.func @transform_7(%arg0: i32) -> i32 {
    %c0_i32 = arith.constant 0 : i32
    %c0_i32_0 = arith.constant 0 : i32
    return %c0_i32 : i32
  }
  func.func @transform_8(%arg0: i32) -> (i32, i32) {
    %c0_i32 = arith.constant 0 : i32
    %c0_i32_0 = arith.constant 0 : i32
    return %c0_i32, %arg0 : i32, i32
  }
}

</mosaic_0001>

<llo_original>
// kernel: tpu_custom_call.1
$region0: #{tpu_custom_call.1}
  #allocation0 [shape = 'u32[]', space=smem, size = 0x4, offset = 0x4, fixed_abs, tag = 'smem constant byte address 0x4 - core index']
  #allocation1 [shape = 'u32[72,128]{1,0:T(1,128)}', space=vmem, size = 0x9000, scoped, tag = 'internal scratch']
  #allocation2 [shape = 'f32[1]{0:T(128)S(6)}', space=smem, size = 0x200, scoped, tag = 'scoped memory for tpu_custom_call.1']
  %s0 = inlined_call_operand.vmem [shape: f32[16,24], index: 0, kind: input, shape index: {}]
  %s1 = inlined_call_operand.vmem [shape: f32[17,6], index: 1, kind: input, shape index: {}]
  %s2 = inlined_call_operand.vmem [shape: bf16[24,128], index: 2, kind: input, shape index: {}]
  %s3 = inlined_call_operand.vmem [shape: f32[1,128], index: 3, kind: input, shape index: {}]
  %s4 = inlined_call_operand.hbm [shape: bf16[134,128], index: 4, kind: input, shape index: {}]
  %s5 = inlined_call_operand.vmem [shape: f32[1,128], index: 5, kind: input, shape index: {}]
  %s6 = inlined_call_operand.vmem [shape: f32[1,128], index: 6, kind: input, shape index: {}]
  %s7 = inlined_call_operand.<no memory space> [shape: f32[1], index: 7, kind: input, shape index: {}]
  %s8 = inlined_call_operand.hbm [shape: f32[1,16], index: 8, kind: output, shape index: {}]
  %s9 = sld [smem:[#allocation0]]
  $region46: #{tpu_custom_call.1} parent=0
    _
  %s11 = ssub.s32 1, %s9
  %s12 = scalar_select 0, %s11, %s9
  %13 = sst [smem:[#allocation2]] %s7
  $region1: #{tpu_custom_call.1} parent=0
    #allocation3 [shape = 'u8[34816]{0}', space=vmem, size = 0x8800, scoped, tag = 'input window, operand 4, single buffered']
    #allocation4 [shape = 's32[1]{0}', space=sflag, size = 0x4, scoped, tag = 'scoped memory for tpu_custom_call.1']
    #allocation5 [shape = 's32[1]{0}', space=sflag, size = 0x4, scoped, tag = 'scoped memory for tpu_custom_call.1']
    #allocation6 [shape = 'u8[512]{0}', space=vmem, size = 0x400, scoped, tag = 'output window, operand 0, single buffered']
    %14 = vsyncpa [#allocation4], 0
    %15 = vsyncpa [#allocation5], 0
    // Predicated region
    $region2: #{tpu_custom_call.1} parent=1 // pred_check
      _
    $region3: #{tpu_custom_call.1} parent=1 // pred_check_branch
      %17 = sbr.rel (0) target = $region5
    $region4: #{tpu_custom_call.1} parent=1 // pred_region
      _
    $region5: #{tpu_custom_call.1} parent=1 // pred_fallthru
      _
    // Predicated region
    $region6: #{tpu_custom_call.1} parent=1 // pred_check
      _
    $region7: #{tpu_custom_call.1} parent=1 // pred_check_branch
      %19 = sbr.rel (0) target = $region9
    $region8: #{tpu_custom_call.1} parent=1 // pred_region
      _
    $region9: #{tpu_custom_call.1} parent=1 // pred_fallthru
      _
    // Predicated region
    $region10: #{tpu_custom_call.1} parent=1 // pred_check
      _
    $region11: #{tpu_custom_call.1} parent=1 // pred_check_branch
      %21 = sbr.rel (0) target = $region13
    $region12: #{tpu_custom_call.1} parent=1 // pred_region
      _
    $region13: #{tpu_custom_call.1} parent=1 // pred_fallthru
      _
    // Predicated region
    $region14: #{tpu_custom_call.1} parent=1 // pred_check
      _
    $region15: #{tpu_custom_call.1} parent=1 // pred_check_branch
      %23 = sbr.rel (0) target = $region17
    $region16: #{tpu_custom_call.1} parent=1 // pred_region
      _
    $region17: #{tpu_custom_call.1} parent=1 // pred_fallthru
      _
    // Predicated region
    $region18: #{tpu_custom_call.1} parent=1 // pred_check
      _
    $region19: #{tpu_custom_call.1} parent=1 // pred_check_branch
      %25 = sbr.rel (0) target = $region21
    $region20: #{tpu_custom_call.1} parent=1 // pred_region
      %27 = vsyncadd [#allocation4], 0
      %s28 = sshll.u32 %s4, 4
      %s29 = int_to_ptr.hbm [resolvable:$true] %s28
      %s30 = sshll.u32 [#allocation3], 4
      %s31 = int_to_ptr.vmem [resolvable:$true] %s30
      %36 = dma.hbm_to_vmem [thread:$0]  %s29, 1088, %s31, [#allocation4], 64, 64, 4
    $region21: #{tpu_custom_call.1} parent=1 // pred_fallthru
      _
    // Predicated region
    $region22: #{tpu_custom_call.1} parent=1 // pred_check
      _
    $region23: #{tpu_custom_call.1} parent=1 // pred_check_branch
      %38 = sbr.rel (0) target = $region25
    $region24: #{tpu_custom_call.1} parent=1 // pred_region
      _
    $region25: #{tpu_custom_call.1} parent=1 // pred_fallthru
      _
    // Predicated region
    $region26: #{tpu_custom_call.1} parent=1 // pred_check
      _
    $region27: #{tpu_custom_call.1} parent=1 // pred_check_branch
      %40 = sbr.rel (0) target = $region29
    $region28: #{tpu_custom_call.1} parent=1 // pred_region
      _
    $region29: #{tpu_custom_call.1} parent=1 // pred_fallthru
      _
    // Predicated region
    $region30: #{tpu_custom_call.1} parent=1 // pred_check
      _
    $region31: #{tpu_custom_call.1} parent=1 // pred_check_branch
      %42 = sbr.rel (0) target = $region33
    $region32: #{tpu_custom_call.1} parent=1 // pred_region
      _
    $region33: #{tpu_custom_call.1} parent=1 // pred_fallthru
      _
    // Predicated region
    $region34: #{tpu_custom_call.1} parent=1 // pred_check
      _
    $region35: #{tpu_custom_call.1} parent=1 // pred_check_branch
      %44 = sbr.rel (0) target = $region37
    $region36: #{tpu_custom_call.1} parent=1 // pred_region
      %46 = dma.done [#allocation4], 1088
    $region37: #{tpu_custom_call.1} parent=1 // pred_fallthru
      _
    %v48 = vld [vmem:[%s0] sm:$0xff]
    %v49 = vld [vmem:[%s0 + $0x8] sm:$0xff]
    %v50 = vpack.c.bf16 %v49, %v48
    %v51 = vld [vmem:[%s2] sm:$0xf]
    %v52 = vld [vmem:[%s2 + $0x4] sm:$0xf]
    %v53 = vld [vmem:[%s2 + $0x8] sm:$0xf]
    %v54 = vld [vmem:[%s3] sm:$0x1]
    %v56 = vperm.slane %v54, 0
    %v61 = vunpack.c.l.b16 %v51
    %v62 = vunpack.c.l.b16 %v52
    %v63 = vunpack.c.l.b16 %v53
    %v64 = vpack.c.b16 %v62, %v61
    %v65 = vpack.c.b16 %v63, %v63
    %vm67 = vcmask 195584
    %v69 = vsel %vm67, %v50, 0
    %vm71 = vcmask 1043456
    %v73 = vsel %vm71, %v65, 0
    %75 = vmatpush.bf16.msra.mxu0 0
    %76 = vmatpush.bf16.msra.mxu0 0
    %77 = vmatpush.bf16.msra.mxu0 0
    %78 = vmatpush.bf16.msra.mxu0 0
    %79 = vmatpush.bf16.msra.mxu0 0
    %80 = vmatpush.bf16.msra.mxu0 0
    %81 = vmatpush.bf16.msra.mxu0 %v73
    %82 = vmatpush.bf16.msra.mxu0 %v64
    %83 = vmatmul.bf16.gmra.mxu0 %v69
    %v84 = vpop.f32.mrf.mxu0
    %v85 = vadd.f32 %v56, %v84
    %v86 = vpop.f32.mrf.mxu0
    %v87 = vadd.f32 %v56, %v86
    %88 = vdwg.mxu0
    %v89 = vmax.f32 %v85, 0.0
    %v90 = vmax.f32 %v87, 0.0
    %v91 = vpack.c.bf16 %v89, %v89
    %v92 = vpack.c.bf16 %v90, %v90
    %v93 = vld [vmem:[%s1] sm:$0xff]
    %v94 = vld [vmem:[%s1 + $0x8] sm:$0xff]
    %v95 = vpack.c.bf16 %v93, %v93
    %v96 = vpack.c.bf16 %v94, %v94
    %v99 = vunpack.c.l.b16 %v91
    %v100 = vunpack.c.l.b16 %v92
    %v101 = vpack.c.b16 %v100, %v99
    %v105 = vunpack.c.l.b16 %v95
    %v106 = vunpack.c.l.b16 %v96
    %v107 = vpack.c.b16 %v106, %v105
    %v108 = vld [vmem:[#allocation3] sm:$0xf]
    %v109 = vld [vmem:[#allocation3 + $0x4] sm:$0xf]
    %v110 = vld [vmem:[#allocation3 + $0x8] sm:$0xf]
    %v111 = vld [vmem:[#allocation3 + $0xc] sm:$0xf]
    %v112 = vld [vmem:[#allocation3 + $0x10] sm:$0xf]
    %v113 = vld [vmem:[#allocation3 + $0x14] sm:$0xf]
    %v114 = vld [vmem:[#allocation3 + $0x18] sm:$0xf]
    %v115 = vld [vmem:[#allocation3 + $0x1c] sm:$0xf]
    %v116 = vld [vmem:[#allocation3 + $0x20] sm:$0xf]
    %v117 = vld [vmem:[#allocation3 + $0x24] sm:$0xf]
    %v118 = vld [vmem:[#allocation3 + $0x28] sm:$0xf]
    %v119 = vld [vmem:[#allocation3 + $0x2c] sm:$0xf]
    %v120 = vld [vmem:[#allocation3 + $0x30] sm:$0xf]
    %v121 = vld [vmem:[#allocation3 + $0x34] sm:$0xf]
    %v122 = vld [vmem:[#allocation3 + $0x38] sm:$0xf]
    %v123 = vld [vmem:[#allocation3 + $0x3c] sm:$0xf]
    %v124 = vld [vmem:[#allocation3 + $0x40] sm:$0x7]
    %v125 = vld [vmem:[%s5] sm:$0x1]
    %v127 = vperm.slane %v125, 0
    %v146 = vunpack.c.l.b16 %v108
    %v147 = vunpack.c.l.b16 %v109
    %v148 = vunpack.c.l.b16 %v110
    %v149 = vunpack.c.l.b16 %v111
    %v150 = vunpack.c.l.b16 %v112
    %v151 = vunpack.c.l.b16 %v113
    %v152 = vunpack.c.l.b16 %v114
    %v153 = vunpack.c.l.b16 %v115
    %v154 = vunpack.c.l.b16 %v116
    %v155 = vunpack.c.l.b16 %v117
    %v156 = vunpack.c.l.b16 %v118
    %v157 = vunpack.c.l.b16 %v119
    %v158 = vunpack.c.l.b16 %v120
    %v159 = vunpack.c.l.b16 %v121
    %v160 = vunpack.c.l.b16 %v122
    %v161 = vunpack.c.l.b16 %v123
    %v162 = vunpack.c.l.b16 %v124
    %v163 = vpack.c.b16 %v147, %v146
    %v164 = vpack.c.b16 %v149, %v148
    %v165 = vpack.c.b16 %v151, %v150
    %v166 = vpack.c.b16 %v153, %v152
    %v167 = vpack.c.b16 %v155, %v154
    %v168 = vpack.c.b16 %v157, %v156
    %v169 = vpack.c.b16 %v159, %v158
    %v170 = vpack.c.b16 %v161, %v160
    %v171 = vpack.c.b16 %v162, %v162
    %vm180 = vcmask 48128
    %v182 = vsel %vm180, %v107, 0
    %vm184 = vcmask 1042432
    %v186 = vsel %vm184, %v171, 0
    %188 = vmatpush.bf16.msra.mxu0 %v170
    %189 = vmatpush.bf16.msra.mxu0 %v169
    %190 = vmatpush.bf16.msra.mxu0 %v168
    %191 = vmatpush.bf16.msra.mxu0 %v167
    %192 = vmatpush.bf16.msra.mxu0 %v166
    %193 = vmatpush.bf16.msra.mxu0 %v165
    %194 = vmatpush.bf16.msra.mxu0 %v164
    %195 = vmatpush.bf16.msra.mxu0 %v163
    %196 = vmatmul.bf16.gmra.mxu0 %v101
    %v197 = vpop.f32.mrf.mxu0
    %v198 = vadd.f32 %v127, %v197
    %v199 = vpop.f32.mrf.mxu0
    %v200 = vadd.f32 %v127, %v199
    %201 = vdwg.mxu0
    %202 = vmatpush.bf16.msra.mxu0 0
    %203 = vmatpush.bf16.msra.mxu0 0
    %204 = vmatpush.bf16.msra.mxu0 0
    %205 = vmatpush.bf16.msra.mxu0 0
    %206 = vmatpush.bf16.msra.mxu0 0
    %207 = vmatpush.bf16.msra.mxu0 0
    %208 = vmatpush.bf16.msra.mxu0 0
    %209 = vmatpush.bf16.msra.mxu0 %v186
    %210 = vmatmul.bf16.gmra.mxu0 %v182
    %v211 = vpop.f32.mrf.mxu0
    %v212 = vadd.f32 %v198, %v211
    %v213 = vpop.f32.mrf.mxu0
    %v214 = vadd.f32 %v200, %v213
    %215 = vdwg.mxu0
    %v216 = vmax.f32 %v212, 0.0
    %v217 = vmax.f32 %v214, 0.0
    %v218 = vld [vmem:[%s6] sm:$0x1]
    %s219 = sld [smem:[#allocation2]]
    %v220 = vstv %s219
    %221 = vmatpush.xpose.msra.mxu0 0.0
    %222 = vmatpush.xpose.msra.mxu0 0.0
    %223 = vmatpush.xpose.msra.mxu0 0.0
    %224 = vmatpush.xpose.msra.mxu0 0.0
    %225 = vmatpush.xpose.msra.mxu0 0.0
    %226 = vmatpush.xpose.msra.mxu0 0.0
    %227 = vmatpush.xpose.msra.mxu0 0.0
    %228 = vmatpush.xpose.msra.mxu0 0.0
    %229 = vmatpush.xpose.msra.mxu0 0.0
    %230 = vmatpush.xpose.msra.mxu0 0.0
    %231 = vmatpush.xpose.msra.mxu0 0.0
    %232 = vmatpush.xpose.msra.mxu0 0.0
    %233 = vmatpush.xpose.msra.mxu0 0.0
    %234 = vmatpush.xpose.msra.mxu0 0.0
    %235 = vmatpush.xpose.msra.mxu0 %v217
    %236 = vmatpush.xpose.msra.mxu0 %v216
    %237 = vmatmul.f32.gmra.mxu0 %v218
    %v238 = vpop.f32.mrf.mxu0
    %v239 = vadd.f32 %v220, %v238
    %240 = vdwg.mxu0
    %vm241 = vcmask 122880
    %242 = vst.msk [vmem:[#allocation6] sm:$0x1] %vm241, %v239
    // Predicated region
    $region38: #{tpu_custom_call.1} parent=1 // pred_check
      _
    $region39: #{tpu_custom_call.1} parent=1 // pred_check_branch
      %244 = sbr.rel (0) target = $region41
    $region40: #{tpu_custom_call.1} parent=1 // pred_region
      %246 = vsyncadd [#allocation5], 0
      %s248 = sshll.u32 [#allocation6], 4
      %s249 = int_to_ptr.vmem [resolvable:$true] %s248
      %s250 = sshll.u32 %s8, 4
      %s251 = int_to_ptr.hbm [resolvable:$true] %s250
      %253 = dma.vmem_to_hbm [thread:$0]  %s249, 16, %s251, [#allocation5]
    $region41: #{tpu_custom_call.1} parent=1 // pred_fallthru
      _
    // Predicated region
    $region42: #{tpu_custom_call.1} parent=1 // pred_check
      _
    $region43: #{tpu_custom_call.1} parent=1 // pred_check_branch
      %255 = sbr.rel (0) target = $region45
    $region44: #{tpu_custom_call.1} parent=1 // pred_region
      %257 = dma.done [#allocation5], 16
    $region45: #{tpu_custom_call.1} parent=1 // pred_fallthru
      _
    %258 = vsyncpa [#allocation4], 1
    %259 = vsyncpa [#allocation5], 1

</llo_original>
